<compile_context>
chip_gen: v6e
topology: v6e:2x2x1
jax: 0.10.0
libtpu: 0.0.40
codegen_flags: <defaults>
</compile_context>

<pallas_src>
import functools
import math

import jax
import jax.numpy as jnp
from jax.experimental import pallas as pl
from jax.experimental.pallas import tpu as pltpu

_LANE = 128
_SUBLANE = 8
_ROW_ALIGN = 32                 # block row counts legal for f32/bf16/int8 packing
_TARGET_TILE_BYTES = 4 << 20    # ~4 MiB per streamed input per grid step

model_bsList = ['browDownLeft', 'browDownRight', 'browInnerUp', 'browOuterUpLeft',
                'browOuterUpRight', 'cheekPuff', 'cheekSquintLeft', 'cheekSquintRight',
                'eyeBlinkLeft', 'eyeBlinkRight', 'eyeLookDownLeft', 'eyeLookDownRight',
                'eyeLookInLeft', 'eyeLookInRight', 'eyeLookOutLeft', 'eyeLookOutRight',
                'eyeLookUpLeft', 'eyeLookUpRight', 'eyeSquintLeft', 'eyeSquintRight',
                'eyeWideLeft', 'eyeWideRight', 'jawForward', 'jawLeft', 'jawOpen',
                'jawRight', 'mouthClose', 'mouthDimpleLeft', 'mouthDimpleRight',
                'mouthFrownLeft', 'mouthFrownRight', 'mouthFunnel', 'mouthLeft',
                'mouthLowerDownLeft', 'mouthLowerDownRight', 'mouthPressLeft',
                'mouthPressRight', 'mouthPucker', 'mouthRight', 'mouthRollLower',
                'mouthRollUpper', 'mouthShrugLower', 'mouthShrugUpper',
                'mouthSmileLeft', 'mouthSmileRight', 'mouthStretchLeft',
                'mouthStretchRight', 'mouthUpperUpLeft', 'mouthUpperUpRight',
                'noseSneerLeft', 'noseSneerRight', 'tongueOut']


def make_weight_map():
    """Deterministic parameter init, identical to the PyTorch __init__."""
    weight_map = []
    for name in model_bsList:
        if any(key in name for key in ['mouth', 'jaw', 'tongue', 'brow']):
            weight_map.append(0.4)
        elif any(key in name for key in ['eye', 'cheek', 'nose']):
            weight_map.append(0.3)
        else:
            weight_map.append(0.1)
    return jnp.asarray(weight_map, dtype=jnp.float32)  # shape (52,)


def _round_up(x, m):
    return ((x + m - 1) // m) * m


@functools.lru_cache(maxsize=1)
def _detect_num_tensorcores():
    """Best-effort TensorCore count per chip: 2 on v7x, 1 on v5e/v6e."""
    try:
        info = pltpu.get_tpu_info()
        for attr in ("num_cores", "num_tensorcores", "tensor_cores_per_chip",
                     "tensorcores_per_chip", "core_count"):
            n = getattr(info, attr, None)
            if isinstance(n, int) and n > 0:
                return max(1, min(int(n), 2))
    except Exception:
        pass
    try:
        kind = jax.devices()[0].device_kind.lower()
        if "v7" in kind or "7x" in kind:
            return 2
    except Exception:
        pass
    return 1


def _make_kernel(tile_rows, acc_rows, n_inner, valid_rows):
    """Kernel body shared by both layouts. Accumulates UNWEIGHTED |p - t|."""
    groups = tile_rows // acc_rows  # exact by construction

    def kernel(p_ref, t_ref, o_ref):
        c = pl.program_id(0)          # TensorCore partition axis ("parallel")
        i = pl.program_id(1)          # row-tile index within the partition

        @pl.when(i == 0)
        def _init():                  # fresh accumulator per core partition
            o_ref[...] = jnp.zeros_like(o_ref)

        # Stream in native dtype, do the math in f32 after load.
        p = p_ref[...].astype(jnp.float32)
        t = t_ref[...].astype(jnp.float32)
        contrib = jnp.abs(p - t)                       # (tile_rows, L)
        lanes = contrib.shape[-1]

        # Intended (unclamped) first row of this tile.
        start = (c * n_inner + i) * tile_rows

        @pl.when(start + tile_rows <= valid_rows)      # fully in-range tile
        def _full_tile():
            o_ref[...] += contrib.reshape(groups, acc_rows, lanes).sum(axis=0)

        @pl.when(start + tile_rows > valid_rows)       # ragged / clamped OOB tile
        def _ragged_tile():
            rows = start + jax.lax.broadcasted_iota(jnp.int32, contrib.shape, 0)
            masked = jnp.where(rows < valid_rows, contrib, 0.0)
            o_ref[...] += masked.reshape(groups, acc_rows, lanes).sum(axis=0)

    return kernel


def region_weighted_l1_loss(pred, target, weight, *, num_parallel=None,
                            tile_rows=None):
    """pred/target: (B, T, C) float (f32 or bf16); weight: (C,). Returns scalar mean."""
    assert pred.shape == target.shape
    C = int(pred.shape[-1])
    total = 1
    for d in pred.shape:
        total *= int(d)
    weight = weight.astype(jnp.float32).reshape(-1)
    assert weight.shape[0] == C
    itemsize = int(jnp.dtype(pred.dtype).itemsize)

    if total % _LANE == 0:
        # Lane-dense layout: view the flat data as (R, 128) -- free bitcast.
        R = total // _LANE
        period = math.lcm(C, _LANE) // _LANE           # weight pattern period: 13 rows
        acc_rows = math.lcm(period, _SUBLANE)          # 104 -> per-core accumulator rows
        step = math.lcm(acc_rows, _ROW_ALIGN)          # 416 -> tile-row granularity
        L = _LANE
        p2 = pred.reshape(R, L)
        t2 = target.reshape(R, L)
        reps = (acc_rows * L) // C                     # exact: 104*128/52 = 256
        w_fold = jnp.tile(weight, reps).reshape(acc_rows, L)   # tiny (104, 128) slab
    else:
        # Fallback layout: fold a factor of 2 into the lane dim when possible
        # (L=104 -> ~81% lane utilization instead of ~41% at L=52).
        R0 = total // C
        fold = 2 if (R0 % 2 == 0 and 2 * C <= _LANE) else 1
        R = R0 // fold
        L = C * fold
        acc_rows = _SUBLANE
        step = _ROW_ALIGN
        p2 = pred.reshape(R, L)
        t2 = target.reshape(R, L)
        w_fold = jnp.tile(weight, fold).reshape(1, L)  # channel depends on lane only

    # Dtype-aware tile sizing: ~4 MiB of streamed data per input per step.
    if tile_rows is None:
        tile_rows = max(_TARGET_TILE_BYTES // (L * itemsize), step)
    tile_rows = int(min(_round_up(int(tile_rows), step), _round_up(R, step)))

    n_tiles = (R + tile_rows - 1) // tile_rows
    if num_parallel is None:
        num_parallel = _detect_num_tensorcores()
    num_parallel = max(1, min(int(num_parallel), n_tiles))
    n_inner = (n_tiles + num_parallel - 1) // num_parallel
    max_block = n_tiles - 1

    def data_map(c, i):
        idx = c * n_inner + i
        # Clamp fully-out-of-range tiles (their rows are masked to zero anyway).
        return (jnp.minimum(idx, max_block), 0)

    out_rows = num_parallel * acc_rows

    # VMEM budget: 2 inputs x 2 buffers + f32 elementwise temporaries + slack.
    block_bytes = tile_rows * L * itemsize
    vmem_needed = 4 * block_bytes + 2 * tile_rows * L * 4 + 4 * acc_rows * L * 4 + (4 << 20)
    vmem_limit = int(min(max(vmem_needed, 32 << 20), 56 << 20))

    partials = pl.pallas_call(
        _make_kernel(tile_rows, acc_rows, n_inner, R),
        out_shape=jax.ShapeDtypeStruct((out_rows, L), jnp.float32),
        grid_spec=pltpu.PrefetchScalarGridSpec(
            num_scalar_prefetch=0,
            grid=(num_parallel, n_inner),
            in_specs=[
                pl.BlockSpec((tile_rows, L), data_map),    # pred rows
                pl.BlockSpec((tile_rows, L), data_map),    # target rows
            ],
            out_specs=pl.BlockSpec((acc_rows, L), lambda c, i: (c, 0)),
        ),
        compiler_params=pltpu.CompilerParams(
            dimension_semantics=("parallel", "arbitrary"),
            vmem_limit_bytes=vmem_limit,
        ),
        cost_estimate=pl.CostEstimate(
            flops=3 * total,
            transcendentals=0,
            bytes_accessed=2 * total * itemsize + out_rows * L * 4,
        ),
    )(p2, t2)

    # Apply the region weight once on the tiny per-core partials, then the mean.
    weighted = partials.reshape(num_parallel, acc_rows, L) * w_fold[None]
    return jnp.sum(weighted) / jnp.float32(total)


if __name__ == "__main__":
    key = jax.random.PRNGKey(0)
    weight = make_weight_map()
    C = len(model_bsList)   # 52

    def reference(p, t, w):
        return jnp.mean(jnp.abs(p.astype(jnp.float32) - t.astype(jnp.float32))
                        * w.reshape(1, 1, -1).astype(jnp.float32))

    tests = [
        dict(B=2, T=8, dtype=jnp.float32),                     # fallback, fold=2 (L=104), single tile
        dict(B=5, T=7, dtype=jnp.bfloat16),                    # fallback, fold=1 (L=52), bf16 stream
        dict(B=4, T=16, dtype=jnp.float32),                    # lane-dense, single ragged tile
        dict(B=3, T=24, dtype=jnp.float32,
             tile_rows=32, num_parallel=2),                    # fallback multi-tile, 2-way split
        dict(B=2, T=640, dtype=jnp.float32,
             tile_rows=416, num_parallel=2),                   # dense multi-tile, 2-way split
        dict(B=4, T=640, dtype=jnp.bfloat16,
             tile_rows=416, num_parallel=2),                   # dense bf16, odd n_tiles -> clamped OOB tile
    ]

    for cfg in tests:
        B, T, dtype = cfg.pop("B"), cfg.pop("T"), cfg.pop("dtype")
        key, k1, k2 = jax.random.split(key, 3)
        pred = jax.random.normal(k1, (B, T, C), dtype=jnp.float32).astype(dtype)
        target = jax.random.normal(k2, (B, T, C), dtype=jnp.float32).astype(dtype)

        loss = jax.block_until_ready(
            region_weighted_l1_loss(pred, target, weight, **cfg))
        ref = jax.block_until_ready(reference(pred, target, weight))
        assert jnp.allclose(loss, ref, rtol=1e-4, atol=1e-6), \
            (B, T, dtype, float(loss), float(ref))

    print("KERNEL_OK")
</pallas_src>

<mosaic_0001>
module attributes {stable_mosaic.version = 11 : i64} {
  func.func @kernel(%arg0: i32, %arg1: i32, %arg2: memref<32x104xf32, #tpu.memory_space<vmem>>, %arg3: memref<32x104xf32, #tpu.memory_space<vmem>>, %arg4: memref<8x104xf32, #tpu.memory_space<vmem>>) attributes {dimension_semantics = [#tpu.dimension_semantics<parallel>, #tpu.dimension_semantics<arbitrary>], iteration_bounds = array<i64: 1, 1>, scalar_prefetch = 0 : i64, scratch_operands = 0 : i64, tpu.core_type = #tpu.core_type<tc>, window_params = [{transform_indices = @transform_0, window_bounds = array<i64: 32, 104>}, {transform_indices = @transform_1, window_bounds = array<i64: 32, 104>}, {transform_indices = @transform_2, window_bounds = array<i64: 8, 104>}]} {
    %c0_i32 = arith.constant 0 : i32
    %0 = arith.cmpi eq, %arg1, %c0_i32 : i32
    %1 = arith.extui %0 : i1 to i32
    %c0_i32_0 = arith.constant 0 : i32
    %2 = arith.cmpi ne, %1, %c0_i32_0 : i32
    scf.if %2 {
      %cst = arith.constant 0.000000e+00 : f32
      %18 = vector.broadcast %cst : f32 to vector<8x104xf32>
      %c0_9 = arith.constant 0 : index
      %c0_10 = arith.constant 0 : index
      %19 = vector.load %arg4[%c0_9, %c0_10] : memref<8x104xf32, #tpu.memory_space<vmem>>, vector<8x104xf32>
      tpu.vector_store %arg4[%c0_9, %c0_10], %18 {strides = array<i32>} : memref<8x104xf32, #tpu.memory_space<vmem>>, vector<8x104xf32>,
    } else {
    }
    %c0 = arith.constant 0 : index
    %c0_1 = arith.constant 0 : index
    %3 = vector.load %arg2[%c0, %c0_1] : memref<32x104xf32, #tpu.memory_space<vmem>>, vector<32x104xf32>
    %c0_2 = arith.constant 0 : index
    %c0_3 = arith.constant 0 : index
    %4 = vector.load %arg3[%c0_2, %c0_3] : memref<32x104xf32, #tpu.memory_space<vmem>>, vector<32x104xf32>
    %5 = arith.subf %3, %4 : vector<32x104xf32>
    %6 = math.absf %5 : vector<32x104xf32>
    %c1_i32 = arith.constant 1 : i32
    %7 = arith.muli %arg0, %c1_i32 : i32
    %8 = arith.addi %7, %arg1 : i32
    %c32_i32 = arith.constant 32 : i32
    %9 = arith.muli %8, %c32_i32 : i32
    %c32_i32_4 = arith.constant 32 : i32
    %10 = arith.addi %9, %c32_i32_4 : i32
    %c8_i32 = arith.constant 8 : i32
    %11 = arith.cmpi sle, %10, %c8_i32 : i32
    %12 = arith.extui %11 : i1 to i32
    %c0_i32_5 = arith.constant 0 : i32
    %13 = arith.cmpi ne, %12, %c0_i32_5 : i32
    scf.if %13 {
      %c0_9 = arith.constant 0 : index
      %c0_10 = arith.constant 0 : index
      %18 = vector.load %arg4[%c0_9, %c0_10] : memref<8x104xf32, #tpu.memory_space<vmem>>, vector<8x104xf32>
      %19 = vector.shape_cast %6 : vector<32x104xf32> to vector<4x8x104xf32>
      %cst = arith.constant dense<0.000000e+00> : vector<8x104xf32>
      %20 = vector.multi_reduction <add>, %19, %cst [0] : vector<4x8x104xf32> to vector<8x104xf32>
      %21 = arith.addf %18, %20 : vector<8x104xf32>
      %c0_11 = arith.constant 0 : index
      %c0_12 = arith.constant 0 : index
      %22 = vector.load %arg4[%c0_11, %c0_12] : memref<8x104xf32, #tpu.memory_space<vmem>>, vector<8x104xf32>
      tpu.vector_store %arg4[%c0_11, %c0_12], %21 {strides = array<i32>} : memref<8x104xf32, #tpu.memory_space<vmem>>, vector<8x104xf32>,
    } else {
    }
    %c32_i32_6 = arith.constant 32 : i32
    %14 = arith.addi %9, %c32_i32_6 : i32
    %c8_i32_7 = arith.constant 8 : i32
    %15 = arith.cmpi sgt, %14, %c8_i32_7 : i32
    %16 = arith.extui %15 : i1 to i32
    %c0_i32_8 = arith.constant 0 : i32
    %17 = arith.cmpi ne, %16, %c0_i32_8 : i32
    scf.if %17 {
      %18 = tpu.iota {dimensions = array<i32: 0>} : vector<32x104xi32>
      %19 = vector.broadcast %9 : i32 to vector<32x104xi32>
      %20 = arith.addi %19, %18 : vector<32x104xi32>
      %c8_i32_9 = arith.constant 8 : i32
      %21 = vector.broadcast %c8_i32_9 : i32 to vector<32x104xi32>
      %22 = arith.cmpi slt, %20, %21 : vector<32x104xi32>
      %cst = arith.constant 0.000000e+00 : f32
      %23 = vector.broadcast %cst : f32 to vector<32x104xf32>
      %24 = arith.select %22, %6, %23 : vector<32x104xi1>, vector<32x104xf32>
      %c0_10 = arith.constant 0 : index
      %c0_11 = arith.constant 0 : index
      %25 = vector.load %arg4[%c0_10, %c0_11] : memref<8x104xf32, #tpu.memory_space<vmem>>, vector<8x104xf32>
      %26 = vector.shape_cast %24 : vector<32x104xf32> to vector<4x8x104xf32>
      %cst_12 = arith.constant dense<0.000000e+00> : vector<8x104xf32>
      %27 = vector.multi_reduction <add>, %26, %cst_12 [0] : vector<4x8x104xf32> to vector<8x104xf32>
      %28 = arith.addf %25, %27 : vector<8x104xf32>
      %c0_13 = arith.constant 0 : index
      %c0_14 = arith.constant 0 : index
      %29 = vector.load %arg4[%c0_13, %c0_14] : memref<8x104xf32, #tpu.memory_space<vmem>>, vector<8x104xf32>
      tpu.vector_store %arg4[%c0_13, %c0_14], %28 {strides = array<i32>} : memref<8x104xf32, #tpu.memory_space<vmem>>, vector<8x104xf32>,
    } else {
    }
    return
  }
  func.func @transform_0(%arg0: i32, %arg1: i32) -> (i32, i32) {
    %c1_i32 = arith.constant 1 : i32
    %0 = arith.muli %arg0, %c1_i32 : i32
    %1 = arith.addi %0, %arg1 : i32
    %c0_i32 = arith.constant 0 : i32
    %2 = arith.minsi %1, %c0_i32 : i32
    %c0_i32_0 = arith.constant 0 : i32
    %c0_i32_1 = arith.constant 0 : i32
    return %2, %c0_i32_0 : i32, i32
  }
  func.func @transform_1(%arg0: i32, %arg1: i32) -> (i32, i32) {
    %c1_i32 = arith.constant 1 : i32
    %0 = arith.muli %arg0, %c1_i32 : i32
    %1 = arith.addi %0, %arg1 : i32
    %c0_i32 = arith.constant 0 : i32
    %2 = arith.minsi %1, %c0_i32 : i32
    %c0_i32_0 = arith.constant 0 : i32
    %c0_i32_1 = arith.constant 0 : i32
    return %2, %c0_i32_0 : i32, i32
  }
  func.func @transform_2(%arg0: i32, %arg1: i32) -> (i32, i32) {
    %c0_i32 = arith.constant 0 : i32
    %c0_i32_0 = arith.constant 0 : i32
    return %arg0, %c0_i32 : i32, i32
  }
}

</mosaic_0001>

<llo_original>
// kernel: tpu_custom_call.1
$region0: #{tpu_custom_call.1}
  #allocation0 [shape = 'u32[]', space=smem, size = 0x4, offset = 0x4, fixed_abs, tag = 'smem constant byte address 0x4 - core index']
  #allocation1 [shape = 'u32[144,128]{1,0:T(1,128)}', space=vmem, size = 0x12000, scoped, tag = 'internal scratch']
  %s0 = inlined_call_operand.hbm [shape: f32[8,104], index: 0, kind: input, shape index: {}]
  %s1 = inlined_call_operand.hbm [shape: f32[8,104], index: 1, kind: input, shape index: {}]
  %s2 = inlined_call_operand.hbm [shape: f32[8,104], index: 2, kind: output, shape index: {}]
  %s3 = sld [smem:[#allocation0]]
  $region38: #{tpu_custom_call.1} parent=0
    _
  %s5 = ssub.s32 1, %s3
  %s6 = scalar_select 0, %s5, %s3
  $region1: #{tpu_custom_call.1} parent=0
    #allocation2 [shape = 'u8[16384]{0}', space=vmem, size = 0x4000, scoped, tag = 'input window, operand 0, single buffered']
    #allocation3 [shape = 's32[1]{0}', space=sflag, size = 0x4, scoped, tag = 'scoped memory for tpu_custom_call.1']
    #allocation4 [shape = 's32[1]{0}', space=sflag, size = 0x4, scoped, tag = 'scoped memory for tpu_custom_call.1']
    #allocation5 [shape = 'u8[16384]{0}', space=vmem, size = 0x4000, scoped, tag = 'input window, operand 1, single buffered']
    #allocation6 [shape = 's32[1]{0}', space=sflag, size = 0x4, scoped, tag = 'scoped memory for tpu_custom_call.1']
    #allocation7 [shape = 'u8[4096]{0}', space=vmem, size = 0x1000, scoped, tag = 'output window, operand 0, single buffered']
    %7 = vsyncpa [#allocation3], 0
    %8 = vsyncpa [#allocation6], 0
    %9 = vsyncpa [#allocation4], 0
    // Predicated region
    $region2: #{tpu_custom_call.1} parent=1 // pred_check
      _
    $region3: #{tpu_custom_call.1} parent=1 // pred_check_branch
      %11 = sbr.rel (0) target = $region5
    $region4: #{tpu_custom_call.1} parent=1 // pred_region
      %s12 = sadd.s32 0, 0
      %p13 = scmp.lt.s32.totalorder %s12, 0
      %s14 = scalar_select %p13, %s12, 0
      %s15 = smul.u32 4, %s14
      %s16 = ssub.s32 1, %s15
      %s17 = smul.u32 128, %s16
      %s19 = ssub.s32 512, %s17
      %20 = vsyncadd [#allocation3], %s19
      %p21 = scmp.ne.s32.totalorder 0, %s17
      %s22 = smul.addr %s15, 128
      %s23 = scalar_lea.hbm %s0, %s22
      %s24 = smul.u32 8, %s16
      %s25 = sshll.u32 [#allocation2], 4
      %s26 = int_to_ptr.vmem [resolvable:$true] %s25
      %s27 = sshll.u32 %s24, 4
      %31 = dma.hbm_to_vmem [thread:$0]  (%p21), %s23, %s27, %s26, [#allocation3], 128, 128, 8
    $region5: #{tpu_custom_call.1} parent=1 // pred_fallthru
      _
    // Predicated region
    $region6: #{tpu_custom_call.1} parent=1 // pred_check
      _
    $region7: #{tpu_custom_call.1} parent=1 // pred_check_branch
      %33 = sbr.rel (0) target = $region9
    $region8: #{tpu_custom_call.1} parent=1 // pred_region
      %s34 = sadd.s32 0, 0
      %p35 = scmp.lt.s32.totalorder %s34, 0
      %s36 = scalar_select %p35, %s34, 0
      %s37 = smul.u32 4, %s36
      %s38 = ssub.s32 1, %s37
      %s39 = smul.u32 128, %s38
      %s41 = ssub.s32 512, %s39
      %42 = vsyncadd [#allocation6], %s41
      %p43 = scmp.ne.s32.totalorder 0, %s39
      %s44 = smul.addr %s37, 128
      %s45 = scalar_lea.hbm %s1, %s44
      %s46 = smul.u32 8, %s38
      %s47 = sshll.u32 [#allocation5], 4
      %s48 = int_to_ptr.vmem [resolvable:$true] %s47
      %s49 = sshll.u32 %s46, 4
      %53 = dma.hbm_to_vmem [thread:$0]  (%p43), %s45, %s49, %s48, [#allocation6], 128, 128, 8
    $region9: #{tpu_custom_call.1} parent=1 // pred_fallthru
      _
    // Predicated region
    $region10: #{tpu_custom_call.1} parent=1 // pred_check
      _
    $region11: #{tpu_custom_call.1} parent=1 // pred_check_branch
      %55 = sbr.rel (0) target = $region13
    $region12: #{tpu_custom_call.1} parent=1 // pred_region
      %56 = dma.done [#allocation3], 512
    $region13: #{tpu_custom_call.1} parent=1 // pred_fallthru
      _
    // Predicated region
    $region14: #{tpu_custom_call.1} parent=1 // pred_check
      _
    $region15: #{tpu_custom_call.1} parent=1 // pred_check_branch
      %58 = sbr.rel (0) target = $region17
    $region16: #{tpu_custom_call.1} parent=1 // pred_region
      %59 = dma.done [#allocation6], 512
    $region17: #{tpu_custom_call.1} parent=1 // pred_fallthru
      _
    %s60 = sadd.s32 0, 0
    %p61 = scmp.lt.s32.totalorder %s60, 0
    %s62 = scalar_select %p61, %s60, 0
    %s63 = smul.u32 4, %s62
    %s64 = ssub.s32 1, %s63
    %s65 = smul.u32 128, %s64
    %s66 = sadd.s32 0, 0
    %p67 = scmp.lt.s32.totalorder %s66, 0
    %s68 = scalar_select %p67, %s66, 0
    %s69 = smul.u32 4, %s68
    %s70 = ssub.s32 1, %s69
    %s71 = smul.u32 128, %s70
    %p72 = scmp.eq.s32.totalorder 0, 0
    // Predicated region
    $region18: #{tpu_custom_call.1} parent=1 // pred_check
      %p73 = pneg %p72
    $region19: #{tpu_custom_call.1} parent=1 // pred_check_branch
      %75 = sbr.rel (%p73) target = $region21
    $region20: #{tpu_custom_call.1} parent=1 // pred_region
      %vm76 = vcmask 850944
      %77 = vst.msk [vmem:[#allocation7] sm:$0xff] %vm76, 0.0
    $region21: #{tpu_custom_call.1} parent=1 // pred_fallthru
      _
    %v78 = vld [vmem:[#allocation2] sm:$0xff]
    %v79 = vld [vmem:[#allocation2 + $0x8] sm:$0xff]
    %v80 = vld [vmem:[#allocation2 + $0x10] sm:$0xff]
    %v81 = vld [vmem:[#allocation2 + $0x18] sm:$0xff]
    %v82 = vld [vmem:[#allocation5] sm:$0xff]
    %v83 = vld [vmem:[#allocation5 + $0x8] sm:$0xff]
    %v84 = vld [vmem:[#allocation5 + $0x10] sm:$0xff]
    %v85 = vld [vmem:[#allocation5 + $0x18] sm:$0xff]
    %v86 = vsub.f32 %v78, %v82
    %v87 = vsub.f32 %v79, %v83
    %v88 = vsub.f32 %v80, %v84
    %v89 = vsub.f32 %v81, %v85
    %v90 = vand.u32 2147483647, %v86
    %v91 = vand.u32 2147483647, %v87
    %v92 = vand.u32 2147483647, %v88
    %v93 = vand.u32 2147483647, %v89
    %s94 = sadd.s32 0, 0
    %s95 = smul.u32 %s94, 32
    %s96 = sadd.s32 %s95, 32
    %p97 = scmp.le.s32.totalorder %s96, 8
    // Predicated region
    $region22: #{tpu_custom_call.1} parent=1 // pred_check
      %p98 = pneg %p97
    $region23: #{tpu_custom_call.1} parent=1 // pred_check_branch
      %100 = sbr.rel (%p98) target = $region25
    $region24: #{tpu_custom_call.1} parent=1 // pred_region
      %v101 = vld [vmem:[#allocation7] sm:$0xff]
      %vm102 = vcmask 850944
      %v103 = vsel %vm102, %v90, 0.0
      %v104 = vsel %vm102, %v91, 0.0
      %v105 = vadd.f32 %v103, %v104
      %v106 = vsel %vm102, %v92, 0.0
      %v107 = vadd.f32 %v105, %v106
      %v108 = vsel %vm102, %v93, 0.0
      %v109 = vadd.f32 %v107, %v108
      %v110 = vadd.f32 %v101, %v109
      %111 = vst.msk [vmem:[#allocation7] sm:$0xff] %vm102, %v110
    $region25: #{tpu_custom_call.1} parent=1 // pred_fallthru
      _
    %p112 = scmp.gt.s32.totalorder %s96, 8
    // Predicated region
    $region26: #{tpu_custom_call.1} parent=1 // pred_check
      %p113 = pneg %p112
    $region27: #{tpu_custom_call.1} parent=1 // pred_check_branch
      %115 = sbr.rel (%p113) target = $region29
    $region28: #{tpu_custom_call.1} parent=1 // pred_region
      %v116 = vlaneseq
      %v117 = vshrl.u32 %v116, 7
      %v118 = vadd.s32 %v117, 8
      %v119 = vadd.s32 %v117, 16
      %v120 = vadd.s32 %v117, 24
      %v121 = vstv %s95
      %v122 = vadd.s32 %v121, %v117
      %v123 = vadd.s32 %v121, %v118
      %v124 = vadd.s32 %v121, %v119
      %v125 = vadd.s32 %v121, %v120
      %vm126 = vcmp.lt.s32.totalorder %v122, 8
      %vm127 = vcmp.lt.s32.totalorder %v123, 8
      %vm128 = vcmp.lt.s32.totalorder %v124, 8
      %vm129 = vcmp.lt.s32.totalorder %v125, 8
      %v130 = vsel %vm126, %v90, 0.0
      %v131 = vsel %vm127, %v91, 0.0
      %v132 = vsel %vm128, %v92, 0.0
      %v133 = vsel %vm129, %v93, 0.0
      %v134 = vld [vmem:[#allocation7] sm:$0xff]
      %vm135 = vcmask 850944
      %v136 = vsel %vm135, %v130, 0.0
      %v137 = vsel %vm135, %v131, 0.0
      %v138 = vadd.f32 %v136, %v137
      %v139 = vsel %vm135, %v132, 0.0
      %v140 = vadd.f32 %v138, %v139
      %v141 = vsel %vm135, %v133, 0.0
      %v142 = vadd.f32 %v140, %v141
      %v143 = vadd.f32 %v134, %v142
      %144 = vst.msk [vmem:[#allocation7] sm:$0xff] %vm135, %v143
    $region29: #{tpu_custom_call.1} parent=1 // pred_fallthru
      _
    // Predicated region
    $region30: #{tpu_custom_call.1} parent=1 // pred_check
      _
    $region31: #{tpu_custom_call.1} parent=1 // pred_check_branch
      %146 = sbr.rel (0) target = $region33
    $region32: #{tpu_custom_call.1} parent=1 // pred_region
      %s148 = ssub.s32 128, 128
      %149 = vsyncadd [#allocation4], %s148
      %s151 = sshll.u32 [#allocation7], 4
      %s152 = int_to_ptr.vmem [resolvable:$true] %s151
      %154 = dma.vmem_to_hbm [thread:$0]  %s152, 128, %s2, [#allocation4]
    $region33: #{tpu_custom_call.1} parent=1 // pred_fallthru
      _
    // Predicated region
    $region34: #{tpu_custom_call.1} parent=1 // pred_check
      _
    $region35: #{tpu_custom_call.1} parent=1 // pred_check_branch
      %156 = sbr.rel (0) target = $region37
    $region36: #{tpu_custom_call.1} parent=1 // pred_region
      %157 = dma.done [#allocation4], 128
    $region37: #{tpu_custom_call.1} parent=1 // pred_fallthru
      _
    %158 = vsyncpa [#allocation3], 1
    %159 = vsyncpa [#allocation6], 1
    %160 = vsyncpa [#allocation4], 1

</llo_original>
